<compile_context>
chip_gen: v7x
topology: tpu7x:2x2x1
jax: 0.10.0
libtpu: 0.0.40
codegen_flags: <defaults>
</compile_context>

<pallas_src>
from collections import OrderedDict

import numpy as np
import jax
import jax.numpy as jnp
from jax.experimental import pallas as pl
from jax.experimental.pallas import tpu as pltpu


def _pick_batch_tile(batch, row_bytes, max_tile_rows):
    """Largest batch tile whose double-buffered VMEM footprint is safe on every
    TPU generation (v7x: 64 MiB VMEM / 32 MiB default scoped limit)."""
    budget = 16 * 1024 * 1024                   # total VMEM allowed for the pipeline
    max_rows = budget // max(2 * row_bytes, 1)  # x2: double buffering
    max_rows = min(max_rows, max_tile_rows)     # >=512 rows already ~85% of HBM BW
    if batch <= max_rows:
        return batch                            # full-extent block: always layout-legal
    return max((max_rows // 8) * 8, 8)          # second-minor block dim must be /8


class VectorExtractor:
    """JAX/Pallas port of the PyTorch VectorExtractor (continuous Box case).

    `space` is an OrderedDict {key: feature_dim}.  Keys listed in `filter_out`
    are skipped in the output; their running index is still advanced, matching
    the original torch bookkeeping.
    """

    def __init__(self, space, filter_out=("pitch", "torque"), max_tile_rows=1024):
        self.keys = OrderedDict()
        indice = 0
        size = 0
        for item, dim in space.items():
            if item not in filter_out:
                self.keys[item] = [indice, indice + dim]
                size += dim
            indice += dim
        self.size = size
        self.max_tile_rows = int(max_tile_rows)
        self._call_cache = {}
        # TODO(synk): the gym.spaces.Box / MultiDiscrete reconstruction of
        # `self.space` is host-side metadata with no compute; not ported.

    # ---- Pallas kernel: batch-tiled scatter of each key into its out slice ----
    def _build_kernel(self, shapes, dtype):
        dims = tuple(int(s[-1]) for s in shapes)
        batch = int(shapes[0][0])
        total = sum(dims)

        itemsize = int(jnp.dtype(dtype).itemsize)
        row_bytes = 2 * total * itemsize        # per batch row: all inputs + output
        tb = _pick_batch_tile(batch, row_bytes, self.max_tile_rows)
        grid = (pl.cdiv(batch, tb),)

        # Static output-column offset of every kept key (contiguous run).
        offsets = []
        off = 0
        for d in dims:
            offsets.append(off)
            off += d

        def concat_kernel(*refs):
            in_refs = refs[:-1]
            out_ref = refs[-1]
            # Static Python offsets -> static slice stores (masked only where
            # the key's width is sub-lane); no dynamic lane arithmetic.
            for r, d, o in zip(in_refs, dims, offsets):
                out_ref[:, o:o + d] = r[...]

        return pl.pallas_call(
            concat_kernel,
            out_shape=jax.ShapeDtypeStruct((batch, total), dtype),
            grid_spec=pltpu.PrefetchScalarGridSpec(
                num_scalar_prefetch=0,
                grid=grid,
                in_specs=[pl.BlockSpec((tb, d), lambda i: (i, 0)) for d in dims],
                out_specs=pl.BlockSpec((tb, total), lambda i: (i, 0)),
            ),
            compiler_params=pltpu.CompilerParams(
                # Megacore sharding of the batch axis on v7x; no-op on v5e/v6e.
                dimension_semantics=("parallel",),
            ),
        )

    def forward(self, dic):
        xs = [jnp.atleast_2d(jnp.asarray(dic[key])) for key in self.keys]
        batch = xs[0].shape[0]
        if any(x.shape[0] != batch for x in xs):
            raise ValueError("all dict entries must share the same batch dimension")
        # Promote mixed dtypes up front; the promoted dtype keys the kernel cache.
        common = jnp.result_type(*[x.dtype for x in xs])
        xs = [x.astype(common) for x in xs]
        shapes = tuple(x.shape for x in xs)
        cache_key = (shapes, jnp.dtype(common).name)
        if cache_key not in self._call_cache:
            self._call_cache[cache_key] = self._build_kernel(shapes, common)
        out = self._call_cache[cache_key](*xs)
        # np.concatenate(...).squeeze() drops ALL singleton dims (so B=1 -> 1-D),
        # kept intentionally to match the original numpy semantics.
        return jnp.squeeze(out)

    def make_dict(self, vector):
        return {k: vector[..., i1:i2] for k, (i1, i2) in self.keys.items()}


if __name__ == "__main__":
    # Synthetic "dict observation space": Box entries of dimension d_k.
    space = OrderedDict(
        [("position", 3), ("velocity", 3), ("pitch", 2), ("goal", 4), ("torque", 1)]
    )

    def make_inputs(batch, key, dtypes=None):
        dic = {}
        for name, dim in space.items():
            key, sub = jax.random.split(key)
            dt = jnp.float32 if dtypes is None else dtypes.get(name, jnp.float32)
            dic[name] = jax.random.normal(sub, (batch, dim), dtype=jnp.float32).astype(dt)
        return dic, key

    key = jax.random.PRNGKey(0)

    # Case 1: small batch -> single full-extent block (filters 'pitch', 'torque').
    extractor = VectorExtractor(space)
    dic, key = make_inputs(2, key)
    out = jax.block_until_ready(extractor.forward(dic))
    expected = jnp.concatenate(
        [jnp.atleast_2d(dic[k]) for k in extractor.keys], axis=1
    ).squeeze()
    assert out.shape == (2, extractor.size), (out.shape, extractor.size)
    np.testing.assert_allclose(np.asarray(out), np.asarray(expected), rtol=0, atol=0)

    # Case 2: larger batch with a small tile cap -> multi-block pipelined grid,
    # plus one bf16 entry to exercise the dtype-promotion path.
    tiled = VectorExtractor(space, max_tile_rows=8)
    dic2, key = make_inputs(24, key, dtypes={"goal": jnp.bfloat16})
    out2 = jax.block_until_ready(tiled.forward(dic2))
    expected2 = jnp.concatenate(
        [jnp.atleast_2d(dic2[k]).astype(jnp.float32) for k in tiled.keys], axis=1
    ).squeeze()
    assert out2.shape == (24, tiled.size), (out2.shape, tiled.size)
    np.testing.assert_allclose(np.asarray(out2), np.asarray(expected2), rtol=0, atol=0)

    print("KERNEL_OK")
</pallas_src>

<mosaic_0001>
module attributes {stable_mosaic.version = 11 : i64} {
  func.func @concat_kernel(%arg0: i32, %arg1: memref<2x3xf32, #tpu.memory_space<vmem>>, %arg2: memref<2x3xf32, #tpu.memory_space<vmem>>, %arg3: memref<2x4xf32, #tpu.memory_space<vmem>>, %arg4: memref<2x10xf32, #tpu.memory_space<vmem>>) attributes {dimension_semantics = [#tpu.dimension_semantics<parallel>], iteration_bounds = array<i64: 1>, scalar_prefetch = 0 : i64, scratch_operands = 0 : i64, tpu.core_type = #tpu.core_type<tc>, window_params = [{transform_indices = @transform_0, window_bounds = array<i64: 2, 3>}, {transform_indices = @transform_1, window_bounds = array<i64: 2, 3>}, {transform_indices = @transform_2, window_bounds = array<i64: 2, 4>}, {transform_indices = @transform_3, window_bounds = array<i64: 2, 10>}]} {
    %c0 = arith.constant 0 : index
    %c0_0 = arith.constant 0 : index
    %0 = vector.load %arg1[%c0, %c0_0] : memref<2x3xf32, #tpu.memory_space<vmem>>, vector<2x3xf32>
    %c0_1 = arith.constant 0 : index
    %c0_2 = arith.constant 0 : index
    %1 = vector.load %arg4[%c0_1, %c0_2] : memref<2x10xf32, #tpu.memory_space<vmem>>, vector<2x3xf32>
    tpu.vector_store %arg4[%c0_1, %c0_2], %0 {strides = array<i32>} : memref<2x10xf32, #tpu.memory_space<vmem>>, vector<2x3xf32>,
    %c0_3 = arith.constant 0 : index
    %c0_4 = arith.constant 0 : index
    %2 = vector.load %arg2[%c0_3, %c0_4] : memref<2x3xf32, #tpu.memory_space<vmem>>, vector<2x3xf32>
    %c0_5 = arith.constant 0 : index
    %c3 = arith.constant 3 : index
    %3 = vector.load %arg4[%c0_5, %c3] : memref<2x10xf32, #tpu.memory_space<vmem>>, vector<2x3xf32>
    tpu.vector_store %arg4[%c0_5, %c3], %2 {strides = array<i32>} : memref<2x10xf32, #tpu.memory_space<vmem>>, vector<2x3xf32>,
    %c0_6 = arith.constant 0 : index
    %c0_7 = arith.constant 0 : index
    %4 = vector.load %arg3[%c0_6, %c0_7] : memref<2x4xf32, #tpu.memory_space<vmem>>, vector<2x4xf32>
    %c0_8 = arith.constant 0 : index
    %c6 = arith.constant 6 : index
    %5 = vector.load %arg4[%c0_8, %c6] : memref<2x10xf32, #tpu.memory_space<vmem>>, vector<2x4xf32>
    tpu.vector_store %arg4[%c0_8, %c6], %4 {strides = array<i32>} : memref<2x10xf32, #tpu.memory_space<vmem>>, vector<2x4xf32>,
    return
  }
  func.func @transform_0(%arg0: i32) -> (i32, i32) {
    %c0_i32 = arith.constant 0 : i32
    %c0_i32_0 = arith.constant 0 : i32
    return %arg0, %c0_i32 : i32, i32
  }
  func.func @transform_1(%arg0: i32) -> (i32, i32) {
    %c0_i32 = arith.constant 0 : i32
    %c0_i32_0 = arith.constant 0 : i32
    return %arg0, %c0_i32 : i32, i32
  }
  func.func @transform_2(%arg0: i32) -> (i32, i32) {
    %c0_i32 = arith.constant 0 : i32
    %c0_i32_0 = arith.constant 0 : i32
    return %arg0, %c0_i32 : i32, i32
  }
  func.func @transform_3(%arg0: i32) -> (i32, i32) {
    %c0_i32 = arith.constant 0 : i32
    %c0_i32_0 = arith.constant 0 : i32
    return %arg0, %c0_i32 : i32, i32
  }
}

</mosaic_0001>

<llo_original>
// kernel: tpu_custom_call.1
$region0: #{tpu_custom_call.1}
  #allocation0 [shape = 'u32[]', space=smem, size = 0x4, offset = 0x4, fixed_abs, tag = 'smem constant byte address 0x4 - core index']
  #allocation1 [shape = 'u32[144,128]{1,0:T(1,128)}', space=vmem, size = 0x12000, scoped, tag = 'internal scratch']
  %s0 = inlined_call_operand.hbm [shape: f32[2,3], index: 0, kind: input, shape index: {}]
  %s1 = inlined_call_operand.vmem [shape: f32[2,3], index: 1, kind: input, shape index: {}]
  %s2 = inlined_call_operand.vmem [shape: f32[2,4], index: 2, kind: input, shape index: {}]
  %s3 = inlined_call_operand.hbm [shape: f32[2,10], index: 3, kind: output, shape index: {}]
  %s4 = sld [smem:[#allocation0]]
  $region26: #{tpu_custom_call.1} parent=0
    _
  %s6 = ssub.s32 1, %s4
  %s7 = scalar_select 0, %s6, %s4
  $region1: #{tpu_custom_call.1} parent=0
    #allocation2 [shape = 'u8[1024]{0}', space=vmem, size = 0x400, scoped, tag = 'input window, operand 0, single buffered']
    #allocation3 [shape = 's32[1]{0}', space=sflag, size = 0x4, scoped, tag = 'scoped memory for tpu_custom_call.1']
    #allocation4 [shape = 's32[1]{0}', space=sflag, size = 0x4, scoped, tag = 'scoped memory for tpu_custom_call.1']
    #allocation5 [shape = 'u8[1024]{0}', space=vmem, size = 0x400, scoped, tag = 'output window, operand 0, single buffered']
    %8 = vsyncpa [#allocation3], 0
    %9 = vsyncpa [#allocation4], 0
    // Predicated region
    $region2: #{tpu_custom_call.1} parent=1 // pred_check
      _
    $region3: #{tpu_custom_call.1} parent=1 // pred_check_branch
      %11 = sbr.rel (0) target = $region5
    $region4: #{tpu_custom_call.1} parent=1 // pred_region
      %s13 = ssub.s32 32, 32
      %14 = vsyncadd [#allocation3], %s13
      %s16 = sshll.u32 [#allocation2], 4
      %s17 = int_to_ptr.vmem [resolvable:$true] %s16
      %19 = dma.hbm_to_vmem [thread:$0]  %s0, 32, %s17, [#allocation3]
    $region5: #{tpu_custom_call.1} parent=1 // pred_fallthru
      _
    // Predicated region
    $region6: #{tpu_custom_call.1} parent=1 // pred_check
      _
    $region7: #{tpu_custom_call.1} parent=1 // pred_check_branch
      %21 = sbr.rel (0) target = $region9
    $region8: #{tpu_custom_call.1} parent=1 // pred_region
      _
    $region9: #{tpu_custom_call.1} parent=1 // pred_fallthru
      _
    // Predicated region
    $region10: #{tpu_custom_call.1} parent=1 // pred_check
      _
    $region11: #{tpu_custom_call.1} parent=1 // pred_check_branch
      %23 = sbr.rel (0) target = $region13
    $region12: #{tpu_custom_call.1} parent=1 // pred_region
      _
    $region13: #{tpu_custom_call.1} parent=1 // pred_fallthru
      _
    // Predicated region
    $region14: #{tpu_custom_call.1} parent=1 // pred_check
      _
    $region15: #{tpu_custom_call.1} parent=1 // pred_check_branch
      %25 = sbr.rel (0) target = $region17
    $region16: #{tpu_custom_call.1} parent=1 // pred_region
      %26 = dma.done [#allocation3], 32
    $region17: #{tpu_custom_call.1} parent=1 // pred_fallthru
      _
    %v27 = vld [vmem:[#allocation2] sm:$0x3]
    %vm28 = vcmask 17408
    %29 = vst.msk [vmem:[#allocation5] sm:$0x3] %vm28, %v27
    %v30 = vld [vmem:[%s1] sm:$0x3]
    %32 = vrot.lane.b32.xlu0 %v30, 3
    %v33 = vpop.permute.xlu0 %32
    %vm35 = vcmask 42008
    %36 = vst.msk [vmem:[#allocation5] sm:$0x3] %vm35, %v33
    %v37 = vld [vmem:[%s2] sm:$0x3]
    %39 = vrot.lane.b32.xlu0 %v37, 6
    %v40 = vpop.permute.xlu0 %39
    %vm42 = vcmask 74800
    %43 = vst.msk [vmem:[#allocation5] sm:$0x3] %vm42, %v40
    // Predicated region
    $region18: #{tpu_custom_call.1} parent=1 // pred_check
      _
    $region19: #{tpu_custom_call.1} parent=1 // pred_check_branch
      %45 = sbr.rel (0) target = $region21
    $region20: #{tpu_custom_call.1} parent=1 // pred_region
      %s47 = ssub.s32 32, 32
      %48 = vsyncadd [#allocation4], %s47
      %s50 = sshll.u32 [#allocation5], 4
      %s51 = int_to_ptr.vmem [resolvable:$true] %s50
      %53 = dma.vmem_to_hbm [thread:$0]  %s51, 32, %s3, [#allocation4]
    $region21: #{tpu_custom_call.1} parent=1 // pred_fallthru
      _
    // Predicated region
    $region22: #{tpu_custom_call.1} parent=1 // pred_check
      _
    $region23: #{tpu_custom_call.1} parent=1 // pred_check_branch
      %55 = sbr.rel (0) target = $region25
    $region24: #{tpu_custom_call.1} parent=1 // pred_region
      %56 = dma.done [#allocation4], 32
    $region25: #{tpu_custom_call.1} parent=1 // pred_fallthru
      _
    %57 = vsyncpa [#allocation3], 1
    %58 = vsyncpa [#allocation4], 1

</llo_original>
